<compile_context>
chip_gen: v5e
topology: v5e:2x2
jax: 0.10.0
libtpu: 0.0.40
codegen_flags: <defaults>
</compile_context>

<pallas_src>
import functools
import math

import jax
import jax.numpy as jnp
from jax.experimental import pallas as pl
from jax.experimental.pallas import tpu as pltpu


# ---------------------------------------------------------------------------
# Per-generation configuration
# ---------------------------------------------------------------------------

def _round_up(x, m):
    return ((x + m - 1) // m) * m


def _tpu_config():
    """(vmem_limit_bytes, max_tm, max_tn) based on physical VMEM capacity."""
    cap = 0
    try:
        info = pltpu.get_tpu_info()
        for name in ("vmem_capacity_bytes", "vmem_size_bytes", "vmem_bytes"):
            v = getattr(info, name, None)
            if v:
                cap = int(v)
                break
    except Exception:
        cap = 0
    if cap <= 0:
        cap = 64 * 1024 * 1024  # conservative (v7x-sized) fallback
    vmem_limit = min((cap * 3) // 4, 100 * 1024 * 1024)
    if cap >= 96 * 1024 * 1024:       # v5e / v6e: 128 MiB physical VMEM
        max_tm = max_tn = 1024
    else:                             # v7x: 64 MiB per TensorCore
        max_tm = max_tn = 512
    return vmem_limit, max_tm, max_tn


_VMEM_LIMIT_BYTES, _MAX_TM, _MAX_TN = _tpu_config()


def _sublane_granule(dtype):
    return max(8, 32 // jnp.dtype(dtype).itemsize)


def _max_tk(x_dtype, y_dtype):
    itemsize = max(jnp.dtype(x_dtype).itemsize, jnp.dtype(y_dtype).itemsize)
    return 2048 if itemsize <= 2 else 1024


def _choose_tile(dim, max_tile, align, min_tile):
    """Return (tile, padded_dim).

    dim <= max_tile : single full-dim block, rounded up to `align`.
    otherwise       : largest 128-multiple divisor in [min_tile, max_tile],
                      else the tile in that range with the least padding waste.
    """
    if dim <= max_tile:
        t = _round_up(max(dim, 1), align)
        return t, t
    for t in range(max_tile, min_tile - 1, -128):
        if dim % t == 0:
            return t, dim
    best_t, best_waste = max_tile, None
    for t in range(max_tile, min_tile - 1, -128):
        waste = _round_up(dim, t) - dim
        if best_waste is None or waste < best_waste:
            best_t, best_waste = t, waste
    return best_t, _round_up(dim, best_t)


def _footprint(tm, tn, tk, x_dtype, y_dtype, out_dtype, use_acc):
    """Approximate double-buffered VMEM footprint in bytes."""
    b = 2 * tm * tk * jnp.dtype(x_dtype).itemsize
    b += 2 * tk * tn * jnp.dtype(y_dtype).itemsize
    b += 2 * tm * tn * jnp.dtype(out_dtype).itemsize
    if use_acc:
        b += tm * tn * 4
    return b


# ---------------------------------------------------------------------------
# Kernel (shared by 2-D and batched paths)
# ---------------------------------------------------------------------------

def _mm_kernel(x_ref, y_ref, o_ref, *acc, k_axis):
    """K-innermost reduction.  If an f32 scratch is supplied it is the
    accumulator (cast to o_ref.dtype at the last k step); otherwise the
    resident output block itself accumulates (f32 outputs)."""
    k = pl.program_id(k_axis)
    prod = jnp.dot(x_ref[...], y_ref[...], preferred_element_type=jnp.float32)
    acc_ref = acc[0] if acc else o_ref

    @pl.when(k == 0)
    def _():
        acc_ref[...] = prod

    @pl.when(k > 0)
    def _():
        acc_ref[...] += prod

    if acc:
        @pl.when(k == pl.num_programs(k_axis) - 1)
        def _():
            o_ref[...] = acc_ref[...].astype(o_ref.dtype)


# ---------------------------------------------------------------------------
# pallas_call wrappers
# ---------------------------------------------------------------------------

def _matmul_2d(x, y, out_dtype):
    """x: (M, K), y: (K, N) -> (M, N).  Shared-weight / folded-batch path."""
    M, K = x.shape
    _, N = y.shape
    gm = _sublane_granule(x.dtype)
    max_tk = _max_tk(x.dtype, y.dtype)
    use_acc = jnp.dtype(out_dtype) != jnp.dtype(jnp.float32)

    tm, Mp = _choose_tile(M, _MAX_TM, gm, 256)
    tk, Kp = _choose_tile(K, max_tk, 1, 512)

    # Keep the whole (padded) N band resident in VMEM when it fits, so the
    # (usually huge, folded B*M x K) activation is streamed exactly once.
    Np_full = _round_up(N, 128)
    budget = int(_VMEM_LIMIT_BYTES * 0.7)
    if (Np_full <= 2048
            and _footprint(tm, Np_full, tk, x.dtype, y.dtype, out_dtype,
                           use_acc) <= budget):
        tn, Np = Np_full, Np_full
    else:
        tn, Np = _choose_tile(N, _MAX_TN, 128, 256)

    # Guarantee >= 2 parallel blocks so both v7x TensorCores get work.
    if (Mp // tm) * (Np // tn) == 1 and Mp >= 256 and Mp % (2 * gm) == 0:
        tm = Mp // 2

    # Zero-pad ragged edges (exact for matmul); slice back at the end.
    if (Mp, Kp) != (M, K):
        x = jnp.pad(x, ((0, Mp - M), (0, Kp - K)))
    if (Kp, Np) != (K, N):
        y = jnp.pad(y, ((0, Kp - K), (0, Np - N)))

    grid = (Mp // tm, Np // tn, Kp // tk)
    scratch = [pltpu.VMEM((tm, tn), jnp.float32)] if use_acc else []

    cost = pl.CostEstimate(
        flops=2 * Mp * Np * Kp,
        transcendentals=0,
        bytes_accessed=int(Mp * Kp * jnp.dtype(x.dtype).itemsize
                           + Kp * Np * jnp.dtype(y.dtype).itemsize
                           + Mp * Np * jnp.dtype(out_dtype).itemsize),
    )

    out = pl.pallas_call(
        functools.partial(_mm_kernel, k_axis=2),
        out_shape=jax.ShapeDtypeStruct((Mp, Np), out_dtype),
        grid_spec=pltpu.PrefetchScalarGridSpec(
            num_scalar_prefetch=0,
            grid=grid,
            in_specs=[
                pl.BlockSpec((tm, tk), lambda i, j, k: (i, k)),
                pl.BlockSpec((tk, tn), lambda i, j, k: (k, j)),
            ],
            out_specs=pl.BlockSpec((tm, tn), lambda i, j, k: (i, j)),
            scratch_shapes=scratch,
        ),
        compiler_params=pltpu.CompilerParams(
            dimension_semantics=("parallel", "parallel", "arbitrary"),
            vmem_limit_bytes=_VMEM_LIMIT_BYTES,
        ),
        cost_estimate=cost,
    )(x, y)

    if (Mp, Np) != (M, N):
        out = out[:M, :N]
    return out


def _matmul_batched(x, y, out_dtype, B):
    """x: (B, M, K) or (M, K);  y: (B, K, N) or (K, N)  ->  (B, M, N).

    Unbatched operands are NOT broadcast-materialized: their BlockSpec just
    ignores the batch grid index.
    """
    x_batched = x.ndim == 3
    y_batched = y.ndim == 3
    M, K = x.shape[-2:]
    N = y.shape[-1]
    gm = _sublane_granule(x.dtype)
    max_tk = _max_tk(x.dtype, y.dtype)
    use_acc = jnp.dtype(out_dtype) != jnp.dtype(jnp.float32)

    tm, Mp = _choose_tile(M, _MAX_TM, gm, 256)
    tn, Np = _choose_tile(N, _MAX_TN, 128, 256)
    tk, Kp = _choose_tile(K, max_tk, 1, 512)

    # Guarantee >= 2 parallel blocks (v7x has 2 TensorCores).
    if (B * (Mp // tm) * (Np // tn) == 1 and Mp >= 256
            and Mp % (2 * gm) == 0):
        tm = Mp // 2

    if (Mp, Kp) != (M, K):
        pad = ((0, 0),) * (x.ndim - 2) + ((0, Mp - M), (0, Kp - K))
        x = jnp.pad(x, pad)
    if (Kp, Np) != (K, N):
        pad = ((0, 0),) * (y.ndim - 2) + ((0, Kp - K), (0, Np - N))
        y = jnp.pad(y, pad)

    if x_batched:
        x_spec = pl.BlockSpec((pl.Squeezed(), tm, tk),
                              lambda b, i, j, k: (b, i, k))
    else:
        x_spec = pl.BlockSpec((tm, tk), lambda b, i, j, k: (i, k))

    if y_batched:
        y_spec = pl.BlockSpec((pl.Squeezed(), tk, tn),
                              lambda b, i, j, k: (b, k, j))
    else:
        y_spec = pl.BlockSpec((tk, tn), lambda b, i, j, k: (k, j))

    grid = (B, Mp // tm, Np // tn, Kp // tk)
    scratch = [pltpu.VMEM((tm, tn), jnp.float32)] if use_acc else []

    x_bytes = (B if x_batched else 1) * Mp * Kp * jnp.dtype(x.dtype).itemsize
    y_bytes = (B if y_batched else 1) * Kp * Np * jnp.dtype(y.dtype).itemsize
    cost = pl.CostEstimate(
        flops=2 * B * Mp * Np * Kp,
        transcendentals=0,
        bytes_accessed=int(x_bytes + y_bytes
                           + B * Mp * Np * jnp.dtype(out_dtype).itemsize),
    )

    out = pl.pallas_call(
        functools.partial(_mm_kernel, k_axis=3),
        out_shape=jax.ShapeDtypeStruct((B, Mp, Np), out_dtype),
        grid_spec=pltpu.PrefetchScalarGridSpec(
            num_scalar_prefetch=0,
            grid=grid,
            in_specs=[x_spec, y_spec],
            out_specs=pl.BlockSpec((pl.Squeezed(), tm, tn),
                                   lambda b, i, j, k: (b, i, j)),
            scratch_shapes=scratch,
        ),
        compiler_params=pltpu.CompilerParams(
            dimension_semantics=("parallel", "parallel", "parallel",
                                 "arbitrary"),
            vmem_limit_bytes=_VMEM_LIMIT_BYTES,
        ),
        cost_estimate=cost,
    )(x, y)

    if (Mp, Np) != (M, N):
        out = out[:, :M, :N]
    return out


# ---------------------------------------------------------------------------
# Public entry point: torch.matmul semantics
# ---------------------------------------------------------------------------

@jax.jit
def pallas_matmul(x, y):
    out_dtype = jnp.result_type(x.dtype, y.dtype)

    # torch.matmul 1-D promotion rules (glue, not hot path).
    x1d = x.ndim == 1
    y1d = y.ndim == 1
    if x1d:
        x = x[None, :]          # (K,) -> (1, K)
    if y1d:
        y = y[:, None]          # (K,) -> (K, 1)

    M, K = x.shape[-2:]
    K2, N = y.shape[-2:]
    assert K == K2, f"contracting dims mismatch: {K} vs {K2}"

    x_batch = x.shape[:-2]
    y_batch = y.shape[:-2]
    batch_shape = jnp.broadcast_shapes(x_batch, y_batch)

    if y.ndim == 2:
        # Shared-weight case: fold all x batch dims into M -> one big 2-D
        # matmul with the weight column band resident in VMEM.
        out = _matmul_2d(x.reshape((-1, K)), y, out_dtype)
        out = out.reshape(x.shape[:-1] + (N,))
    elif x.ndim == 2:
        # x unbatched, y batched: x BlockSpec ignores the batch grid axis.
        B = math.prod(batch_shape)
        out = _matmul_batched(x, y.reshape((B, K, N)), out_dtype, B)
        out = out.reshape(batch_shape + (M, N))
    else:
        B = math.prod(batch_shape)

        def _prep(a, a_batch, rc):
            if a_batch == batch_shape:
                return a.reshape((B,) + rc)
            if math.prod(a_batch) == 1:
                return a.reshape(rc)          # size-1 batch: no broadcast copy
            # Genuinely mixed broadcast shapes (rare): materialize.
            return jnp.broadcast_to(a, batch_shape + rc).reshape((B,) + rc)

        xb = _prep(x, x_batch, (M, K))
        yb = _prep(y, y_batch, (K, N))
        out = _matmul_batched(xb, yb, out_dtype, B)
        out = out.reshape(batch_shape + (M, N))

    # Undo 1-D promotions.
    if x1d:
        out = jnp.squeeze(out, axis=-2)
    if y1d:
        out = jnp.squeeze(out, axis=-1)
    return out


if __name__ == "__main__":
    key = jax.random.PRNGKey(0)
    kx, ky, kw = jax.random.split(key, 3)

    # Batched @ batched:  x (batch=2, seq=8, hidden=32) @ y (batch=2, 32, 16)
    x = jax.random.normal(kx, (2, 8, 32), dtype=jnp.float32)
    y = jax.random.normal(ky, (2, 32, 16), dtype=jnp.float32)
    out = jax.block_until_ready(pallas_matmul(x, y))
    ref = jnp.matmul(x, y)
    assert out.shape == ref.shape and out.dtype == ref.dtype
    assert jnp.allclose(out, ref, atol=1e-5, rtol=1e-5)

    # Shared-weight case (y is 2-D) — folded-batch, weight-resident path.
    w = jax.random.normal(kw, (32, 16), dtype=jnp.float32)
    out2 = jax.block_until_ready(pallas_matmul(x, w))
    ref2 = jnp.matmul(x, w)
    assert out2.shape == ref2.shape
    assert jnp.allclose(out2, ref2, atol=1e-5, rtol=1e-5)

    # Unbatched x @ batched y — batch-free x BlockSpec path.
    x2 = jax.random.normal(kx, (8, 32), dtype=jnp.float32)
    out3 = jax.block_until_ready(pallas_matmul(x2, y))
    ref3 = jnp.matmul(x2, y)
    assert out3.shape == ref3.shape
    assert jnp.allclose(out3, ref3, atol=1e-5, rtol=1e-5)

    # bf16 inputs — exercises the f32 VMEM accumulator / cast-on-store path.
    xb16 = x.astype(jnp.bfloat16)
    yb16 = y.astype(jnp.bfloat16)
    out4 = jax.block_until_ready(pallas_matmul(xb16, yb16))
    ref4 = jnp.matmul(xb16.astype(jnp.float32), yb16.astype(jnp.float32))
    assert out4.dtype == jnp.bfloat16 and out4.shape == ref4.shape
    assert jnp.allclose(out4.astype(jnp.float32), ref4, atol=0.3, rtol=5e-2)

    print("KERNEL_OK")
</pallas_src>

<mosaic_0001>
module attributes {stable_mosaic.version = 11 : i64} {
  func.func @_mm_kernel(%arg0: i32, %arg1: i32, %arg2: i32, %arg3: i32, %arg4: memref<1x8x32xf32, #tpu.memory_space<vmem>>, %arg5: memref<1x32x128xf32, #tpu.memory_space<vmem>>, %arg6: memref<1x8x128xf32, #tpu.memory_space<vmem>>) attributes {dimension_semantics = [#tpu.dimension_semantics<parallel>, #tpu.dimension_semantics<parallel>, #tpu.dimension_semantics<parallel>, #tpu.dimension_semantics<arbitrary>], iteration_bounds = array<i64: 2, 1, 1, 1>, scalar_prefetch = 0 : i64, scratch_operands = 0 : i64, tpu.core_type = #tpu.core_type<tc>, window_params = [{transform_indices = @transform_0, window_bounds = array<i64: 1, 8, 32>}, {transform_indices = @transform_1, window_bounds = array<i64: 1, 32, 128>}, {transform_indices = @transform_2, window_bounds = array<i64: 1, 8, 128>}]} {
    %c0 = arith.constant 0 : index
    %c0_0 = arith.constant 0 : index
    %c0_1 = arith.constant 0 : index
    %0 = vector.load %arg4[%c0, %c0_0, %c0_1] : memref<1x8x32xf32, #tpu.memory_space<vmem>>, vector<1x8x32xf32>
    %1 = vector.shape_cast %0 : vector<1x8x32xf32> to vector<8x32xf32>
    %c0_2 = arith.constant 0 : index
    %c0_3 = arith.constant 0 : index
    %c0_4 = arith.constant 0 : index
    %2 = vector.load %arg5[%c0_2, %c0_3, %c0_4] : memref<1x32x128xf32, #tpu.memory_space<vmem>>, vector<1x32x128xf32>
    %3 = vector.shape_cast %2 : vector<1x32x128xf32> to vector<32x128xf32>
    %cst = arith.constant dense<0.000000e+00> : vector<8x128xf32>
    %4 = tpu.matmul %1, %3, %cst {dimension_numbers = #tpu.dot_dimension_numbers<[1], [0], [0], [1], [0, 0, 1, 1], [], []>} : vector<8x32xf32>, vector<32x128xf32>, vector<8x128xf32> -> vector<8x128xf32>
    %c0_i32 = arith.constant 0 : i32
    %5 = arith.cmpi eq, %arg3, %c0_i32 : i32
    %6 = arith.extui %5 : i1 to i32
    %c0_i32_5 = arith.constant 0 : i32
    %7 = arith.cmpi ne, %6, %c0_i32_5 : i32
    scf.if %7 {
      %c0_8 = arith.constant 0 : index
      %c0_9 = arith.constant 0 : index
      %c0_10 = arith.constant 0 : index
      %11 = vector.load %arg6[%c0_8, %c0_9, %c0_10] : memref<1x8x128xf32, #tpu.memory_space<vmem>>, vector<1x8x128xf32>
      %12 = vector.shape_cast %11 : vector<1x8x128xf32> to vector<8x128xf32>
      %13 = vector.shape_cast %4 : vector<8x128xf32> to vector<1x8x128xf32>
      tpu.vector_store %arg6[%c0_8, %c0_9, %c0_10], %13 {strides = array<i32>} : memref<1x8x128xf32, #tpu.memory_space<vmem>>, vector<1x8x128xf32>,
    } else {
    }
    %c0_i32_6 = arith.constant 0 : i32
    %8 = arith.cmpi sgt, %arg3, %c0_i32_6 : i32
    %9 = arith.extui %8 : i1 to i32
    %c0_i32_7 = arith.constant 0 : i32
    %10 = arith.cmpi ne, %9, %c0_i32_7 : i32
    scf.if %10 {
      %c0_8 = arith.constant 0 : index
      %c0_9 = arith.constant 0 : index
      %c0_10 = arith.constant 0 : index
      %11 = vector.load %arg6[%c0_8, %c0_9, %c0_10] : memref<1x8x128xf32, #tpu.memory_space<vmem>>, vector<1x8x128xf32>
      %12 = vector.shape_cast %11 : vector<1x8x128xf32> to vector<8x128xf32>
      %13 = arith.addf %12, %4 : vector<8x128xf32>
      %c0_11 = arith.constant 0 : index
      %c0_12 = arith.constant 0 : index
      %c0_13 = arith.constant 0 : index
      %14 = vector.load %arg6[%c0_11, %c0_12, %c0_13] : memref<1x8x128xf32, #tpu.memory_space<vmem>>, vector<1x8x128xf32>
      %15 = vector.shape_cast %14 : vector<1x8x128xf32> to vector<8x128xf32>
      %16 = vector.shape_cast %13 : vector<8x128xf32> to vector<1x8x128xf32>
      tpu.vector_store %arg6[%c0_11, %c0_12, %c0_13], %16 {strides = array<i32>} : memref<1x8x128xf32, #tpu.memory_space<vmem>>, vector<1x8x128xf32>,
    } else {
    }
    return
  }
  func.func @transform_0(%arg0: i32, %arg1: i32, %arg2: i32, %arg3: i32) -> (i32, i32, i32) {
    %c0_i32 = arith.constant 0 : i32
    return %arg0, %arg1, %arg3 : i32, i32, i32
  }
  func.func @transform_1(%arg0: i32, %arg1: i32, %arg2: i32, %arg3: i32) -> (i32, i32, i32) {
    %c0_i32 = arith.constant 0 : i32
    return %arg0, %arg3, %arg2 : i32, i32, i32
  }
  func.func @transform_2(%arg0: i32, %arg1: i32, %arg2: i32, %arg3: i32) -> (i32, i32, i32) {
    %c0_i32 = arith.constant 0 : i32
    return %arg0, %arg1, %arg2 : i32, i32, i32
  }
}

</mosaic_0001>

<llo_original>
// kernel: pallas_matmul.1
$region0: #{pallas_matmul.1}
  #allocation0 [shape = 'u32[]', space=smem, size = 0x4, offset = 0x4, fixed_abs, tag = 'smem constant byte address 0x4 - core index']
  #allocation1 [shape = 'u32[72,128]{1,0:T(1,128)}', space=vmem, size = 0x9000, scoped, tag = 'internal scratch']
  %s0 = inlined_call_operand.vmem [shape: f32[2,8,32], index: 0, kind: input, shape index: {}]
  %s1 = inlined_call_operand.vmem [shape: f32[2,32,128], index: 1, kind: input, shape index: {}]
  %s2 = inlined_call_operand.hbm [shape: f32[2,8,128], index: 2, kind: output, shape index: {}]
  %s3 = sld [smem:[#allocation0]]
  $region49: #{pallas_matmul.1} parent=0
    _
  %s5 = ssub.s32 1, %s3
  %s6 = scalar_select 0, %s5, %s3
  $region1: #{pallas_matmul.1} parent=0
    #allocation2 [shape = 'u8[8192]{0}', space=vmem, size = 0x2000, scoped, tag = 'output window, operand 0']
    #allocation3 [shape = 's32[2]{0}', space=sflag, size = 0x8, scoped, tag = 'scoped memory for pallas_matmul.1']
    %7 = vsyncpa [#allocation3], 0
    %s8 = scalar_lea.sflag [#allocation3], 1
    %9 = vsyncpa %s8, 0
    loop: start=0, step=1, limit=4
    $region2: #{pallas_matmul.1} parent=1 // loop_pre_header
      _
    $region3: #{pallas_matmul.1} parent=1 // loop_header
      %s11 = sphi 0, %s15
      %p12 = scmp.ge.s32.totalorder %s11, 4
      %s18 = sphi 0, %s44
      %s19 = sphi 0, %s40
      %s20 = sphi 0, %s36
      %s21 = sphi 0, %s32
      %s22 = sphi 0, %s18
      %s23 = sphi 0, %s19
      %s24 = sphi 0, %s20
      %s25 = sphi 0, %s21
      %s26 = sphi 0, %s22
      %s27 = sphi 0, %s23
      %s28 = sphi 0, %s24
      %s29 = sphi 0, %s25
      %s51 = sphi 0, %s53
      %s54 = sphi 0, %s51
      %s55 = sphi 0, %s54
      %s71 = sphi 0, %s55
      %s81 = sphi 0, %s83
      %s84 = sphi 0, %s81
      %s85 = sphi 0, %s84
      %s101 = sphi 0, %s85
      %s111 = sphi 0, %s113
      %s114 = sphi 0, %s111
      %s115 = sphi 0, %s114
      %s131 = sphi 0, %s115
    $region4: #{pallas_matmul.1} parent=1 // loop_header_branch
      %14 = sbr.rel (%p12) target = $region8
    $region5: #{pallas_matmul.1} parent=1 // loop_body
      %s16 = ssub.s32 %s11, 1
      %s17 = ssub.s32 %s11, 2
      %s30 = sadd.s32 1, %s21
      %p31 = scmp.ge.s32.totalorder %s30, 1
      %s32 = scalar_select %p31, 0, %s30
      %s33 = sadd.s32 1, %s20
      %s34 = scalar_select %p31, %s33, %s20
      %p35 = scmp.ge.s32.totalorder %s34, 1
      %s36 = scalar_select %p35, 0, %s34
      %s37 = sadd.s32 1, %s19
      %s38 = scalar_select %p35, %s37, %s19
      %p39 = scmp.ge.s32.totalorder %s38, 1
      %s40 = scalar_select %p39, 0, %s38
      %s41 = sadd.s32 1, %s18
      %s42 = scalar_select %p39, %s41, %s18
      %p43 = scmp.ge.s32.totalorder %s42, 2
      %s44 = scalar_select %p43, 0, %s42
      %s45 = ssub.s32 %s18, %s44
      %s46 = ssub.s32 %s19, %s40
      %s47 = sor.u32 %s45, %s46
      %s48 = ssub.s32 %s21, %s32
      %s49 = sor.u32 %s47, %s48
      %p50 = scmp.eq.s32.totalorder %s49, 0
      %s52 = sadd.s32 %s51, 1
      %s53 = scalar_select %p50, %s51, %s52
      %p56 = pneg %p50
      %p57 = scmp.eq.s32.totalorder %s11, 1
      %p58 = por %p56, %p57
      %p59 = scmp.ne.s32.totalorder %s51, %s54
      %p60 = scmp.eq.s32.totalorder %s11, 0
      %p61 = por %p59, %p60
      %p62 = scmp.ne.s32.totalorder %s51, %s54
      %p63 = scmp.eq.s32.totalorder %s16, 1
      %p64 = por %p62, %p63
      %p65 = scmp.ne.s32.totalorder %s54, %s55
      %p66 = scmp.eq.s32.totalorder %s16, 0
      %p67 = por %p65, %p66
      %p68 = scmp.ne.s32.totalorder %s54, %s55
      %p69 = scmp.eq.s32.totalorder %s17, 1
      %p70 = por %p68, %p69
      %p72 = scmp.ne.s32.totalorder %s55, %s71
      %p73 = scmp.eq.s32.totalorder %s17, 0
      %p74 = por %p72, %p73
      %s75 = ssub.s32 %s18, %s44
      %s76 = ssub.s32 %s21, %s32
      %s77 = sor.u32 %s75, %s76
      %s78 = ssub.s32 %s20, %s36
      %s79 = sor.u32 %s77, %s78
      %p80 = scmp.eq.s32.totalorder %s79, 0
      %s82 = sadd.s32 %s81, 1
      %s83 = scalar_select %p80, %s81, %s82
      %p86 = pneg %p80
      %p87 = scmp.eq.s32.totalorder %s11, 1
      %p88 = por %p86, %p87
      %p89 = scmp.ne.s32.totalorder %s81, %s84
      %p90 = scmp.eq.s32.totalorder %s11, 0
      %p91 = por %p89, %p90
      %p92 = scmp.ne.s32.totalorder %s81, %s84
      %p93 = scmp.eq.s32.totalorder %s16, 1
      %p94 = por %p92, %p93
      %p95 = scmp.ne.s32.totalorder %s84, %s85
      %p96 = scmp.eq.s32.totalorder %s16, 0
      %p97 = por %p95, %p96
      %p98 = scmp.ne.s32.totalorder %s84, %s85
      %p99 = scmp.eq.s32.totalorder %s17, 1
      %p100 = por %p98, %p99
      %p102 = scmp.ne.s32.totalorder %s85, %s101
      %p103 = scmp.eq.s32.totalorder %s17, 0
      %p104 = por %p102, %p103
      %s105 = ssub.s32 %s18, %s44
      %s106 = ssub.s32 %s19, %s40
      %s107 = sor.u32 %s105, %s106
      %s108 = ssub.s32 %s20, %s36
      %s109 = sor.u32 %s107, %s108
      %p110 = scmp.eq.s32.totalorder %s109, 0
      %s112 = sadd.s32 %s111, 1
      %s113 = scalar_select %p110, %s111, %s112
      %p116 = pneg %p110
      %p117 = scmp.eq.s32.totalorder %s11, 1
      %p118 = por %p116, %p117
      %p119 = scmp.ne.s32.totalorder %s111, %s114
      %p120 = scmp.eq.s32.totalorder %s11, 0
      %p121 = por %p119, %p120
      %p122 = scmp.ne.s32.totalorder %s111, %s114
      %p123 = scmp.eq.s32.totalorder %s16, 1
      %p124 = por %p122, %p123
      %p125 = scmp.ne.s32.totalorder %s114, %s115
      %p126 = scmp.eq.s32.totalorder %s16, 0
      %p127 = por %p125, %p126
      %p128 = scmp.ne.s32.totalorder %s114, %s115
      %p129 = scmp.eq.s32.totalorder %s17, 1
      %p130 = por %p128, %p129
      %p132 = scmp.ne.s32.totalorder %s115, %s131
      %p133 = scmp.eq.s32.totalorder %s17, 0
      %p134 = por %p132, %p133
      %p135 = scmp.le.s32.totalorder 1, %s11
      %p136 = scmp.lt.s32.totalorder %s11, 3
      %p137 = pnand %p135, %p136
      %p138 = pneg %p137
      // Predicated region
      $region9: #{pallas_matmul.1} parent=5 // pred_check
        _
      $region10: #{pallas_matmul.1} parent=5 // pred_check_branch
        %140 = sbr.rel (%p137) target = $region12
      $region11: #{pallas_matmul.1} parent=5 // pred_region
        %s141 = ssub.s32 %s11, 1
      $region12: #{pallas_matmul.1} parent=5 // pred_fallthru
        _
      %p142 = scmp.lt.s32.totalorder %s11, 2
      // Predicated region
      $region13: #{pallas_matmul.1} parent=5 // pred_check
        %p143 = pneg %p142
      $region14: #{pallas_matmul.1} parent=5 // pred_check_branch
        %145 = sbr.rel (%p143) target = $region16
      $region15: #{pallas_matmul.1} parent=5 // pred_region
        // Predicated region
        $region17: #{pallas_matmul.1} parent=15 // pred_check
          %p146 = pneg %p61
        $region18: #{pallas_matmul.1} parent=15 // pred_check_branch
          %148 = sbr.rel (%p146) target = $region20
        $region19: #{pallas_matmul.1} parent=15 // pred_region
          %p149 = scmp.lt.s32.totalorder %s18, 1
          %s150 = scalar_select %p149, %s18, 1
          %p151 = scmp.lt.s32.totalorder %s19, 0
          %s152 = scalar_select %p151, %s19, 0
          %p153 = scmp.lt.s32.totalorder %s21, 0
          %s154 = scalar_select %p153, %s21, 0
          %s155 = sadd.s32 %s154, %s152
          %s156 = sadd.s32 %s155, %s150
          %s157 = smul.addr %s156, 8
          %s158 = scalar_lea.vmem %s0, %s157
        $region20: #{pallas_matmul.1} parent=15 // pred_fallthru
          _
        // Predicated region
        $region21: #{pallas_matmul.1} parent=15 // pred_check
          %p159 = pneg %p91
        $region22: #{pallas_matmul.1} parent=15 // pred_check_branch
          %161 = sbr.rel (%p159) target = $region24
        $region23: #{pallas_matmul.1} parent=15 // pred_region
          %s162 = smul.u32 4, %s21
          %p163 = scmp.lt.s32.totalorder %s18, 1
          %s164 = scalar_select %p163, %s18, 1
          %p165 = scmp.lt.s32.totalorder %s162, 3
          %s166 = scalar_select %p165, %s162, 3
          %p167 = scmp.lt.s32.totalorder %s20, 0
          %s168 = scalar_select %p167, %s20, 0
          %s169 = sadd.s32 %s168, %s166
          %s170 = smul.addr %s164, 4
          %s171 = sadd.s32 %s169, %s170
          %s172 = smul.addr %s171, 8
          %s173 = scalar_lea.vmem %s1, %s172
          %s174 = smul.u32 4, %s21
        $region24: #{pallas_matmul.1} parent=15 // pred_fallthru
          _
      $region16: #{pallas_matmul.1} parent=5 // pred_fallthru
        _
      %p175 = scmp.le.s32.totalorder 1, %s11
      %p176 = scmp.lt.s32.totalorder %s11, 3
      %p177 = pnand %p175, %p176
      %p178 = pneg %p177
      // Predicated region
      $region25: #{pallas_matmul.1} parent=5 // pred_check
        _
      $region26: #{pallas_matmul.1} parent=5 // pred_check_branch
        %180 = sbr.rel (%p177) target = $region28
      $region27: #{pallas_matmul.1} parent=5 // pred_region
        %s181 = ssub.s32 %s11, 1
        %p182 = scmp.lt.s32.totalorder %s22, 1
        %s183 = scalar_select %p182, %s22, 1
        %p184 = scmp.lt.s32.totalorder %s23, 0
        %s185 = scalar_select %p184, %s23, 0
        %p186 = scmp.lt.s32.totalorder %s25, 0
        %s187 = scalar_select %p186, %s25, 0
        %s188 = sadd.s32 %s187, %s185
        %s189 = sadd.s32 %s188, %s183
        %s190 = smul.addr %s189, 8
        %s191 = scalar_lea.vmem %s0, %s190
        %p192 = pneg %p67
        %p193 = pneg %p64
        %s194 = smul.u32 4, %s25
        %p195 = scmp.lt.s32.totalorder %s22, 1
        %s196 = scalar_select %p195, %s22, 1
        %p197 = scmp.lt.s32.totalorder %s194, 3
        %s198 = scalar_select %p197, %s194, 3
        %p199 = scmp.lt.s32.totalorder %s24, 0
        %s200 = scalar_select %p199, %s24, 0
        %s201 = sadd.s32 %s200, %s198
        %s202 = smul.addr %s196, 4
        %s203 = sadd.s32 %s201, %s202
        %s204 = smul.addr %s203, 8
        %s205 = scalar_lea.vmem %s1, %s204
        %p206 = pneg %p97
        %p207 = pneg %p94
        %p208 = pneg %p127
        %p209 = pneg %p124
        %s210 = sand.u32 %s114, 1
        %s211 = scalar_lea.sflag [#allocation3], %s210
        %s212 = sand.u32 %s114, 1
        %s213 = smul.addr %s212, 8
        %s214 = scalar_lea.vmem [#allocation2], %s213
        %p215 = scmp.lt.s32.totalorder %s22, 1
        %s216 = scalar_select %p215, %s22, 1
        %p217 = scmp.lt.s32.totalorder %s23, 0
        %s218 = scalar_select %p217, %s23, 0
        %p219 = scmp.lt.s32.totalorder %s25, 0
        %s220 = scalar_select %p219, %s25, 0
        %s221 = sadd.s32 %s220, %s218
        %s222 = sadd.s32 %s221, %s216
        %s223 = smul.addr %s222, 8
        %s224 = scalar_lea.vmem %s0, %s223
        %s225 = smul.u32 4, %s25
        %p226 = scmp.lt.s32.totalorder %s22, 1
        %s227 = scalar_select %p226, %s22, 1
        %p228 = scmp.lt.s32.totalorder %s225, 3
        %s229 = scalar_select %p228, %s225, 3
        %p230 = scmp.lt.s32.totalorder %s24, 0
        %s231 = scalar_select %p230, %s24, 0
        %s232 = sadd.s32 %s231, %s229
        %s233 = smul.addr %s227, 4
        %s234 = sadd.s32 %s232, %s233
        %s235 = smul.addr %s234, 8
        %s236 = scalar_lea.vmem %s1, %s235
        %s237 = smul.u32 4, %s25
        %v238 = vld [vmem:[%s224] sm:$0xff]
        %v239 = vld [vmem:[%s236] sm:$0xff]
        %v240 = vld [vmem:[%s236 + $0x8] sm:$0xff]
        %v241 = vld [vmem:[%s236 + $0x10] sm:$0xff]
        %v242 = vld [vmem:[%s236 + $0x18] sm:$0xff]
        %vm243 = vcmask 261120
        %v245 = vsel %vm243, %v238, 0
        %247 = vmatpush.msra.mxu0 0.0
        %248 = vmatpush.msra.mxu0 0.0
        %249 = vmatpush.msra.mxu0 0.0
        %250 = vmatpush.msra.mxu0 0.0
        %251 = vmatpush.msra.mxu0 0.0
        %252 = vmatpush.msra.mxu0 0.0
        %253 = vmatpush.msra.mxu0 0.0
        %254 = vmatpush.msra.mxu0 0.0
        %255 = vmatpush.msra.mxu0 0.0
        %256 = vmatpush.msra.mxu0 0.0
        %257 = vmatpush.msra.mxu0 0.0
        %258 = vmatpush.msra.mxu0 0.0
        %259 = vmatpush.msra.mxu0 %v242
        %260 = vmatpush.msra.mxu0 %v241
        %261 = vmatpush.msra.mxu0 %v240
        %262 = vmatpush.msra.mxu0 %v239
        %263 = vmatmul.f32.gmra.mxu0 %v245
        %v264 = vpop.f32.mrf.mxu0
        %v265 = vadd.f32 0.0, %v264
        %266 = vdwg.mxu0
        %p267 = scmp.eq.s32.totalorder %s25, 0
        // Predicated region
        $region29: #{pallas_matmul.1} parent=27 // pred_check
          %p268 = pneg %p267
        $region30: #{pallas_matmul.1} parent=27 // pred_check_branch
          %270 = sbr.rel (%p268) target = $region32
        $region31: #{pallas_matmul.1} parent=27 // pred_region
          %271 = vst [vmem:[%s214] sm:$0xff] %v265
        $region32: #{pallas_matmul.1} parent=27 // pred_fallthru
          _
        %p272 = scmp.gt.s32.totalorder %s25, 0
        // Predicated region
        $region33: #{pallas_matmul.1} parent=27 // pred_check
          %p273 = pneg %p272
        $region34: #{pallas_matmul.1} parent=27 // pred_check_branch
          %275 = sbr.rel (%p273) target = $region36
        $region35: #{pallas_matmul.1} parent=27 // pred_region
          %v276 = vld [vmem:[%s214] sm:$0xff]
          %v277 = vadd.f32 %v276, %v265
          %278 = vst [vmem:[%s214] sm:$0xff] %v277
        $region36: #{pallas_matmul.1} parent=27 // pred_fallthru
          _
        %s279 = sand.u32 %s114, 1
        %s280 = scalar_lea.sflag [#allocation3], %s279
        %s281 = sand.u32 %s114, 1
        %s282 = smul.addr %s281, 8
        %s283 = scalar_lea.vmem [#allocation2], %s282
        // Predicated region
        $region37: #{pallas_matmul.1} parent=27 // pred_check
          %p284 = pneg %p124
        $region38: #{pallas_matmul.1} parent=27 // pred_check_branch
          %286 = sbr.rel (%p284) target = $region40
        $region39: #{pallas_matmul.1} parent=27 // pred_region
          %288 = vsyncadd %s280, 0
          %s289 = sadd.s32 %s24, %s23
          %s290 = sadd.s32 %s289, %s22
          %s291 = smul.addr %s290, 8
          %s292 = scalar_lea.hbm %s2, %s291
          %s294 = sshll.u32 %s283, 4
          %s295 = int_to_ptr.vmem [resolvable:$true] %s294
          %s296 = sshll.u32 %s292, 4
          %s297 = int_to_ptr.hbm [resolvable:$true] %s296
          %299 = dma.vmem_to_hbm [thread:$0]  %s295, 128, %s297, %s280
        $region40: #{pallas_matmul.1} parent=27 // pred_fallthru
          _
      $region28: #{pallas_matmul.1} parent=5 // pred_fallthru
        _
      %p300 = scmp.le.s32.totalorder 2, %s11
      // Predicated region
      $region41: #{pallas_matmul.1} parent=5 // pred_check
        %p301 = pneg %p300
      $region42: #{pallas_matmul.1} parent=5 // pred_check_branch
        %303 = sbr.rel (%p301) target = $region44
      $region43: #{pallas_matmul.1} parent=5 // pred_region
        %s304 = ssub.s32 %s11, 2
        // Predicated region
        $region45: #{pallas_matmul.1} parent=43 // pred_check
          %p305 = pneg %p130
        $region46: #{pallas_matmul.1} parent=43 // pred_check_branch
          %307 = sbr.rel (%p305) target = $region48
        $region47: #{pallas_matmul.1} parent=43 // pred_region
          %s308 = sand.u32 %s115, 1
          %s309 = scalar_lea.sflag [#allocation3], %s308
          %s310 = sand.u32 %s115, 1
          %s311 = smul.addr %s310, 8
          %s312 = scalar_lea.vmem [#allocation2], %s311
          %314 = dma.done %s309, 128
        $region48: #{pallas_matmul.1} parent=43 // pred_fallthru
          _
      $region44: #{pallas_matmul.1} parent=5 // pred_fallthru
        _
    $region6: #{pallas_matmul.1} parent=1 // loop_footer
      %s15 = sadd.s32 1, %s11
    $region7: #{pallas_matmul.1} parent=1 // loop_footer_branch
      %10 = sbr.rel target = $region3
    $region8: #{pallas_matmul.1} parent=1 // loop_exit
      _
    %315 = vsyncpa [#allocation3], 1
    %s316 = scalar_lea.sflag [#allocation3], 1
    %317 = vsyncpa %s316, 1

</llo_original>
